<compile_context>
chip_gen: v5e
topology: v5e:2x2
jax: 0.10.0
libtpu: 0.0.40
codegen_flags: <defaults>
</compile_context>

<pallas_src>
import jax
import jax.numpy as jnp
from jax import lax
from jax.experimental import pallas as pl
from jax.experimental.pallas import tpu as pltpu

INPUT_SIZE = 32
HIDDENS = (256, 128, 64, 32, 2)
OUT_PAD = 128            # lane-dense padded width of the final layer
BN_EPS = 1e-5

# Per-layer (in, out) dims; the last layer's out is lane-padded to 128.
LAYER_IN = (INPUT_SIZE, 256, 128, 64, 32)
LAYER_OUT = (256, 128, 64, 32, OUT_PAD)

# Packed parameter slabs:
#   W slab: all 5 weight matrices concatenated along rows, lanes padded to 256.
#   B slab: 5 bias rows stacked into an (8, 256) f32 block (rows 5..7 unused).
W_LANES = 256
_W_ROW_OFF = []
_off = 0
for _kin in LAYER_IN:
    _W_ROW_OFF.append(_off)
    _off += _kin
W_ROW_OFF = tuple(_W_ROW_OFF)
W_ROWS_TOTAL = _off            # 32 + 256 + 128 + 64 + 32 = 512
B_ROWS = 8


def nragent_kernel(x_ref, w_ref, b_ref, o_ref):
    """Fused 5-layer MLP. BN folded into (w, b); eval-mode dropout = identity.

    x_ref: (tb, 32) bf16 activation tile.
    w_ref: (512, 256) bf16 packed weight slab (static row/lane slices per layer).
    b_ref: (8, 256) f32 packed bias slab (one row per layer).
    o_ref: (tb, 128) f32 lane-dense output tile (cols 2..127 are tanh(0)=0).
    """
    h = x_ref[...]                                       # bf16 (tb, 32)
    # Hidden layers: matmul (bf16 operands, f32 accumulate) + bias + ReLU,
    # then store the activation back in bf16 (the cast the next MXU op needs).
    for li in range(4):
        r0, kin, nout = W_ROW_OFF[li], LAYER_IN[li], LAYER_OUT[li]
        y = jnp.dot(h, w_ref[r0:r0 + kin, 0:nout],
                    preferred_element_type=jnp.float32)
        y = y + b_ref[li:li + 1, 0:nout]
        h = jnp.maximum(y, 0.0).astype(jnp.bfloat16)
    # Output layer: matmul + bias + tanh, f32 lane-dense store.
    r0, kin, nout = W_ROW_OFF[4], LAYER_IN[4], LAYER_OUT[4]
    y = jnp.dot(h, w_ref[r0:r0 + kin, 0:nout],
                preferred_element_type=jnp.float32)
    y = y + b_ref[4:5, 0:nout]
    o_ref[...] = jnp.tanh(y).astype(o_ref.dtype)


def _fold_bn(params):
    """Fold eval-mode BatchNorm into the preceding Linear; pad final layer.

    Returns (ws, bs): 5 f32 weight matrices [in, out] and 5 f32 bias rows
    [1, out]; the final layer is zero-padded from 2 to OUT_PAD columns.
    """
    ws, bs = [], []
    for li in (1, 2, 3):
        scale = params[f"g{li}"] * lax.rsqrt(params[f"rv{li}"] + BN_EPS)     # (1, out)
        ws.append(params[f"w{li}"] * scale)                                   # (in, out)
        bs.append((params[f"b{li}"] - params[f"rm{li}"]) * scale + params[f"be{li}"])
    ws.append(params["w4"])
    bs.append(params["b4"])
    w5 = jnp.zeros((LAYER_IN[4], OUT_PAD), jnp.float32).at[:, :HIDDENS[4]].set(params["w5"])
    b5 = jnp.zeros((1, OUT_PAD), jnp.float32).at[:, :HIDDENS[4]].set(params["b5"])
    ws.append(w5)
    bs.append(b5)
    return ws, bs


def _fold_and_pack(params):
    """BN-fold and pack all parameters into one bf16 weight slab + one f32 bias slab."""
    ws, bs = _fold_bn(params)
    w_slab = jnp.zeros((W_ROWS_TOTAL, W_LANES), jnp.float32)
    for li, w in enumerate(ws):
        r0 = W_ROW_OFF[li]
        w_slab = w_slab.at[r0:r0 + w.shape[0], :w.shape[1]].set(w)
    b_slab = jnp.zeros((B_ROWS, W_LANES), jnp.float32)
    for li, b in enumerate(bs):
        b_slab = b_slab.at[li, :b.shape[1]].set(b[0])
    return w_slab.astype(jnp.bfloat16), b_slab


def _choose_batch_tile(B):
    """Batch tile: multiple of 16 (bf16 sublane packing), capped at 2048 rows.

    For multi-step grids, keep the step count even so the 'parallel' axis
    shards evenly across v7x's two TensorCores.
    """
    cap = 2048
    if B <= cap:
        return max(16, pl.cdiv(B, 16) * 16)      # single grid step
    tb = cap
    while tb > 16 and pl.cdiv(B, tb) % 2 != 0:
        tb //= 2
    return tb


def nragent_forward(x, params, *, batch_tile=None):
    B, F = x.shape
    assert F == INPUT_SIZE, F
    tb = _choose_batch_tile(B) if batch_tile is None else batch_tile
    assert tb % 16 == 0, "batch tile must be 16-row aligned (packed bf16 sublanes)"

    steps = pl.cdiv(B, tb)
    Bp = steps * tb

    # Cast the input to bf16 in the wrapper (the kernel rounded it anyway) and
    # pad the batch to a tile multiple.
    xb = x.astype(jnp.bfloat16)
    if Bp != B:
        xb = jnp.pad(xb, ((0, Bp - B), (0, 0)))

    w_slab, b_slab = _fold_and_pack(params)

    in_specs = [
        pl.BlockSpec((tb, INPUT_SIZE), lambda i: (i, 0)),              # activations
        pl.BlockSpec((W_ROWS_TOTAL, W_LANES), lambda i: (0, 0)),       # weight slab
        pl.BlockSpec((B_ROWS, W_LANES), lambda i: (0, 0)),             # bias slab
    ]
    out_spec = pl.BlockSpec((tb, OUT_PAD), lambda i: (i, 0))

    flops = 2 * Bp * sum(k * n for k, n in zip(LAYER_IN, LAYER_OUT))
    bytes_accessed = (Bp * INPUT_SIZE * 2          # bf16 input
                      + int(w_slab.size) * 2       # bf16 weight slab
                      + int(b_slab.size) * 4       # f32 bias slab
                      + Bp * OUT_PAD * 4)          # f32 output
    cost = pl.CostEstimate(flops=flops,
                           transcendentals=Bp * OUT_PAD,
                           bytes_accessed=bytes_accessed)

    out = pl.pallas_call(
        nragent_kernel,
        out_shape=jax.ShapeDtypeStruct((Bp, OUT_PAD), jnp.float32),
        grid_spec=pltpu.PrefetchScalarGridSpec(
            num_scalar_prefetch=0,
            grid=(steps,),
            in_specs=in_specs,
            out_specs=out_spec,
        ),
        compiler_params=pltpu.CompilerParams(
            dimension_semantics=("parallel",),
            vmem_limit_bytes=48 * 1024 * 1024,    # headroom on v5e's 16 MiB default
        ),
        cost_estimate=cost,
    )(xb, w_slab, b_slab)

    return out[:B, :HIDDENS[-1]]


def init_params(key, input_size=INPUT_SIZE):
    """Deterministic synthetic parameters matching NRAgent's shapes.

    Linear weights stored as [in, out] (transposed vs. PyTorch's [out, in]).
    BN / bias params stored as [1, features] rows.
    """
    dims = (input_size,) + HIDDENS
    params = {}
    keys = jax.random.split(key, 32)
    ki = 0

    def nxt():
        nonlocal ki
        k = keys[ki]
        ki += 1
        return k

    for li, (fin, fout) in enumerate(zip(dims[:-1], dims[1:]), start=1):
        bound = 1.0 / jnp.sqrt(jnp.float32(fin))
        params[f"w{li}"] = jax.random.uniform(nxt(), (fin, fout), jnp.float32, -bound, bound)
        params[f"b{li}"] = jax.random.uniform(nxt(), (1, fout), jnp.float32, -bound, bound)

    for li, f in enumerate(HIDDENS[:3], start=1):
        params[f"g{li}"] = 1.0 + 0.1 * jax.random.normal(nxt(), (1, f), jnp.float32)
        params[f"be{li}"] = 0.1 * jax.random.normal(nxt(), (1, f), jnp.float32)
        params[f"rm{li}"] = 0.1 * jax.random.normal(nxt(), (1, f), jnp.float32)
        params[f"rv{li}"] = 0.5 + jax.random.uniform(nxt(), (1, f), jnp.float32)

    return params


def reference_forward_f32(x, params):
    """Plain-JAX f32 reference (original BN form, eval-mode semantics)."""
    h = x
    for li in (1, 2, 3):
        h = h @ params[f"w{li}"] + params[f"b{li}"]
        inv = lax.rsqrt(params[f"rv{li}"] + BN_EPS)
        h = (h - params[f"rm{li}"]) * inv * params[f"g{li}"] + params[f"be{li}"]
        h = jnp.maximum(h, 0.0)
    h = jnp.maximum(h @ params["w4"] + params["b4"], 0.0)
    return jnp.tanh(h @ params["w5"] + params["b5"])


def reference_forward_bf16(x, params):
    """Structural match to the kernel (BN folded, bf16 operands/activations)."""
    ws, bs = _fold_bn(params)
    h = x.astype(jnp.bfloat16)
    for i in range(4):
        y = jnp.dot(h, ws[i].astype(jnp.bfloat16),
                    preferred_element_type=jnp.float32) + bs[i]
        h = jnp.maximum(y, 0.0).astype(jnp.bfloat16)
    y = jnp.dot(h, ws[4].astype(jnp.bfloat16),
                preferred_element_type=jnp.float32) + bs[4]
    return jnp.tanh(y)[:, :HIDDENS[-1]]


if __name__ == "__main__":
    key = jax.random.PRNGKey(0)
    kx, kp = jax.random.split(key)
    params = init_params(kp, INPUT_SIZE)

    # Case 1: small non-tile-multiple batch -> padding, single grid step.
    B1 = 24
    x1 = jax.random.normal(kx, (B1, INPUT_SIZE), jnp.float32)
    out1 = jax.block_until_ready(nragent_forward(x1, params))
    assert out1.shape == (B1, 2), out1.shape
    ref16 = reference_forward_bf16(x1, params)
    assert jnp.allclose(out1, ref16, atol=2e-3, rtol=2e-3), (
        float(jnp.max(jnp.abs(out1 - ref16))))
    ref32 = reference_forward_f32(x1, params)
    assert jnp.allclose(out1, ref32, atol=5e-2, rtol=5e-2), (
        float(jnp.max(jnp.abs(out1 - ref32))))

    # Case 2: explicit small tile -> multi-step grid path is exercised.
    B2 = 48
    x2 = jax.random.normal(jax.random.fold_in(kx, 1), (B2, INPUT_SIZE), jnp.float32)
    out2 = jax.block_until_ready(nragent_forward(x2, params, batch_tile=16))
    assert out2.shape == (B2, 2), out2.shape
    ref16b = reference_forward_bf16(x2, params)
    assert jnp.allclose(out2, ref16b, atol=2e-3, rtol=2e-3), (
        float(jnp.max(jnp.abs(out2 - ref16b))))

    print("KERNEL_OK")
</pallas_src>

<mosaic_0001>
module attributes {stable_mosaic.version = 11 : i64} {
  func.func @nragent_kernel(%arg0: i32, %arg1: memref<32x32xbf16, #tpu.memory_space<vmem>>, %arg2: memref<512x256xbf16, #tpu.memory_space<vmem>>, %arg3: memref<8x256xf32, #tpu.memory_space<vmem>>, %arg4: memref<32x128xf32, #tpu.memory_space<vmem>>) attributes {dimension_semantics = [#tpu.dimension_semantics<parallel>], iteration_bounds = array<i64: 1>, scalar_prefetch = 0 : i64, scratch_operands = 0 : i64, tpu.core_type = #tpu.core_type<tc>, window_params = [{transform_indices = @transform_0, window_bounds = array<i64: 32, 32>}, {pipeline_mode = #tpu.pipeline_mode<synchronous>, transform_indices = @transform_1, window_bounds = array<i64: 512, 256>}, {pipeline_mode = #tpu.pipeline_mode<synchronous>, transform_indices = @transform_2, window_bounds = array<i64: 8, 256>}, {transform_indices = @transform_3, window_bounds = array<i64: 32, 128>}]} {
    %c0 = arith.constant 0 : index
    %c0_0 = arith.constant 0 : index
    %0 = vector.load %arg1[%c0, %c0_0] : memref<32x32xbf16, #tpu.memory_space<vmem>>, vector<32x32xbf16>
    %c0_1 = arith.constant 0 : index
    %c0_2 = arith.constant 0 : index
    %1 = vector.load %arg2[%c0_1, %c0_2] : memref<512x256xbf16, #tpu.memory_space<vmem>>, vector<32x256xbf16>
    %cst = arith.constant dense<0.000000e+00> : vector<32x256xf32>
    %2 = tpu.matmul %0, %1, %cst {dimension_numbers = #tpu.dot_dimension_numbers<[1], [0], [0], [1], [0, 0, 1, 1], [], []>} : vector<32x32xbf16>, vector<32x256xbf16>, vector<32x256xf32> -> vector<32x256xf32>
    %c0_3 = arith.constant 0 : index
    %c0_4 = arith.constant 0 : index
    %3 = vector.load %arg3[%c0_3, %c0_4] : memref<8x256xf32, #tpu.memory_space<vmem>>, vector<1x256xf32>
    %4 = vector.broadcast %3 : vector<1x256xf32> to vector<32x256xf32>
    %5 = arith.addf %2, %4 : vector<32x256xf32>
    %cst_5 = arith.constant 0.000000e+00 : f32
    %6 = vector.broadcast %cst_5 : f32 to vector<32x256xf32>
    %7 = arith.maximumf %5, %6 : vector<32x256xf32>
    %8 = arith.truncf %7 : vector<32x256xf32> to vector<32x256xbf16>
    %c32 = arith.constant 32 : index
    %c0_6 = arith.constant 0 : index
    %9 = vector.load %arg2[%c32, %c0_6] : memref<512x256xbf16, #tpu.memory_space<vmem>>, vector<256x128xbf16>
    %cst_7 = arith.constant dense<0.000000e+00> : vector<32x128xf32>
    %10 = tpu.matmul %8, %9, %cst_7 {dimension_numbers = #tpu.dot_dimension_numbers<[1], [0], [0], [1], [0, 0, 1, 1], [], []>} : vector<32x256xbf16>, vector<256x128xbf16>, vector<32x128xf32> -> vector<32x128xf32>
    %c1 = arith.constant 1 : index
    %c0_8 = arith.constant 0 : index
    %11 = vector.load %arg3[%c1, %c0_8] : memref<8x256xf32, #tpu.memory_space<vmem>>, vector<1x128xf32>
    %12 = vector.broadcast %11 : vector<1x128xf32> to vector<32x128xf32>
    %13 = arith.addf %10, %12 : vector<32x128xf32>
    %cst_9 = arith.constant 0.000000e+00 : f32
    %14 = vector.broadcast %cst_9 : f32 to vector<32x128xf32>
    %15 = arith.maximumf %13, %14 : vector<32x128xf32>
    %16 = arith.truncf %15 : vector<32x128xf32> to vector<32x128xbf16>
    %c288 = arith.constant 288 : index
    %c0_10 = arith.constant 0 : index
    %17 = vector.load %arg2[%c288, %c0_10] : memref<512x256xbf16, #tpu.memory_space<vmem>>, vector<128x64xbf16>
    %cst_11 = arith.constant dense<0.000000e+00> : vector<32x64xf32>
    %18 = tpu.matmul %16, %17, %cst_11 {dimension_numbers = #tpu.dot_dimension_numbers<[1], [0], [0], [1], [0, 0, 1, 1], [], []>} : vector<32x128xbf16>, vector<128x64xbf16>, vector<32x64xf32> -> vector<32x64xf32>
    %c2 = arith.constant 2 : index
    %c0_12 = arith.constant 0 : index
    %19 = vector.load %arg3[%c2, %c0_12] : memref<8x256xf32, #tpu.memory_space<vmem>>, vector<1x64xf32>
    %20 = vector.broadcast %19 : vector<1x64xf32> to vector<32x64xf32>
    %21 = arith.addf %18, %20 : vector<32x64xf32>
    %cst_13 = arith.constant 0.000000e+00 : f32
    %22 = vector.broadcast %cst_13 : f32 to vector<32x64xf32>
    %23 = arith.maximumf %21, %22 : vector<32x64xf32>
    %24 = arith.truncf %23 : vector<32x64xf32> to vector<32x64xbf16>
    %c416 = arith.constant 416 : index
    %c0_14 = arith.constant 0 : index
    %25 = vector.load %arg2[%c416, %c0_14] : memref<512x256xbf16, #tpu.memory_space<vmem>>, vector<64x32xbf16>
    %cst_15 = arith.constant dense<0.000000e+00> : vector<32x32xf32>
    %26 = tpu.matmul %24, %25, %cst_15 {dimension_numbers = #tpu.dot_dimension_numbers<[1], [0], [0], [1], [0, 0, 1, 1], [], []>} : vector<32x64xbf16>, vector<64x32xbf16>, vector<32x32xf32> -> vector<32x32xf32>
    %c3 = arith.constant 3 : index
    %c0_16 = arith.constant 0 : index
    %27 = vector.load %arg3[%c3, %c0_16] : memref<8x256xf32, #tpu.memory_space<vmem>>, vector<1x32xf32>
    %28 = vector.broadcast %27 : vector<1x32xf32> to vector<32x32xf32>
    %29 = arith.addf %26, %28 : vector<32x32xf32>
    %cst_17 = arith.constant 0.000000e+00 : f32
    %30 = vector.broadcast %cst_17 : f32 to vector<32x32xf32>
    %31 = arith.maximumf %29, %30 : vector<32x32xf32>
    %32 = arith.truncf %31 : vector<32x32xf32> to vector<32x32xbf16>
    %c480 = arith.constant 480 : index
    %c0_18 = arith.constant 0 : index
    %33 = vector.load %arg2[%c480, %c0_18] : memref<512x256xbf16, #tpu.memory_space<vmem>>, vector<32x128xbf16>
    %cst_19 = arith.constant dense<0.000000e+00> : vector<32x128xf32>
    %34 = tpu.matmul %32, %33, %cst_19 {dimension_numbers = #tpu.dot_dimension_numbers<[1], [0], [0], [1], [0, 0, 1, 1], [], []>} : vector<32x32xbf16>, vector<32x128xbf16>, vector<32x128xf32> -> vector<32x128xf32>
    %c4 = arith.constant 4 : index
    %c0_20 = arith.constant 0 : index
    %35 = vector.load %arg3[%c4, %c0_20] : memref<8x256xf32, #tpu.memory_space<vmem>>, vector<1x128xf32>
    %36 = vector.broadcast %35 : vector<1x128xf32> to vector<32x128xf32>
    %37 = arith.addf %34, %36 : vector<32x128xf32>
    %38 = math.tanh %37 : vector<32x128xf32>
    %c0_21 = arith.constant 0 : index
    %c0_22 = arith.constant 0 : index
    %39 = vector.load %arg4[%c0_21, %c0_22] : memref<32x128xf32, #tpu.memory_space<vmem>>, vector<32x128xf32>
    tpu.vector_store %arg4[%c0_21, %c0_22], %38 {strides = array<i32>} : memref<32x128xf32, #tpu.memory_space<vmem>>, vector<32x128xf32>,
    return
  }
  func.func @transform_0(%arg0: i32) -> (i32, i32) {
    %c0_i32 = arith.constant 0 : i32
    %c0_i32_0 = arith.constant 0 : i32
    return %arg0, %c0_i32 : i32, i32
  }
  func.func @transform_1(%arg0: i32) -> (i32, i32) {
    %c0_i32 = arith.constant 0 : i32
    %c0_i32_0 = arith.constant 0 : i32
    %c0_i32_1 = arith.constant 0 : i32
    return %c0_i32, %c0_i32_0 : i32, i32
  }
  func.func @transform_2(%arg0: i32) -> (i32, i32) {
    %c0_i32 = arith.constant 0 : i32
    %c0_i32_0 = arith.constant 0 : i32
    %c0_i32_1 = arith.constant 0 : i32
    return %c0_i32, %c0_i32_0 : i32, i32
  }
  func.func @transform_3(%arg0: i32) -> (i32, i32) {
    %c0_i32 = arith.constant 0 : i32
    %c0_i32_0 = arith.constant 0 : i32
    return %arg0, %c0_i32 : i32, i32
  }
}

</mosaic_0001>

<llo_original>
// kernel: tpu_custom_call.1
$region0: #{tpu_custom_call.1}
  #allocation0 [shape = 'u32[]', space=smem, size = 0x4, offset = 0x4, fixed_abs, tag = 'smem constant byte address 0x4 - core index']
  #allocation1 [shape = 'u32[72,128]{1,0:T(1,128)}', space=vmem, size = 0x9000, scoped, tag = 'internal scratch']
  %s0 = inlined_call_operand.hbm [shape: bf16[32,32], index: 0, kind: input, shape index: {}]
  %s1 = inlined_call_operand.hbm [shape: bf16[512,256], index: 1, kind: input, shape index: {}]
  %s2 = inlined_call_operand.hbm [shape: f32[8,256], index: 2, kind: input, shape index: {}]
  %s3 = inlined_call_operand.hbm [shape: f32[32,128], index: 3, kind: output, shape index: {}]
  %s4 = sld [smem:[#allocation0]]
  $region34: #{tpu_custom_call.1} parent=0
    _
  %s6 = ssub.s32 1, %s4
  %s7 = scalar_select 0, %s6, %s4
  $region1: #{tpu_custom_call.1} parent=0
    #allocation2 [shape = 'u8[8192]{0}', space=vmem, size = 0x2000, scoped, tag = 'input window, operand 0, single buffered']
    #allocation3 [shape = 's32[1]{0}', space=sflag, size = 0x4, scoped, tag = 'scoped memory for tpu_custom_call.1']
    #allocation4 [shape = 's32[1]{0}', space=sflag, size = 0x4, scoped, tag = 'scoped memory for tpu_custom_call.1']
    #allocation5 [shape = 'u8[262144]{0}', space=vmem, size = 0x40000, scoped, tag = 'input window, operand 1, single buffered']
    #allocation6 [shape = 's32[1]{0}', space=sflag, size = 0x4, scoped, tag = 'scoped memory for tpu_custom_call.1']
    #allocation7 [shape = 'u8[8192]{0}', space=vmem, size = 0x2000, scoped, tag = 'input window, operand 2, single buffered']
    #allocation8 [shape = 'u8[16384]{0}', space=vmem, size = 0x4000, scoped, tag = 'output window, operand 0, single buffered']
    %8 = vsyncpa [#allocation3], 0
    %9 = vsyncpa [#allocation6], 0
    %10 = vsyncpa [#allocation4], 0
    // Predicated region
    $region2: #{tpu_custom_call.1} parent=1 // pred_check
      _
    $region3: #{tpu_custom_call.1} parent=1 // pred_check_branch
      %12 = sbr.rel (0) target = $region5
    $region4: #{tpu_custom_call.1} parent=1 // pred_region
      %14 = vsyncadd [#allocation3], 0
      %s15 = sshll.u32 %s0, 4
      %s16 = int_to_ptr.hbm [resolvable:$true] %s15
      %s17 = sshll.u32 [#allocation2], 4
      %s18 = int_to_ptr.vmem [resolvable:$true] %s17
      %23 = dma.hbm_to_vmem [thread:$0]  %s16, 256, %s18, [#allocation3], 64, 64, 4
    $region5: #{tpu_custom_call.1} parent=1 // pred_fallthru
      _
    // Predicated region
    $region6: #{tpu_custom_call.1} parent=1 // pred_check
      _
    $region7: #{tpu_custom_call.1} parent=1 // pred_check_branch
      %25 = sbr.rel (0) target = $region9
    $region8: #{tpu_custom_call.1} parent=1 // pred_region
      %27 = vsyncadd [#allocation6], 0
      %s28 = sshll.u32 %s1, 4
      %s29 = int_to_ptr.hbm [resolvable:$true] %s28
      %s30 = sshll.u32 [#allocation5], 4
      %s31 = int_to_ptr.vmem [resolvable:$true] %s30
      %36 = dma.hbm_to_vmem [thread:$0]  %s29, 8192, %s31, [#allocation6], 128, 128, 8
    $region9: #{tpu_custom_call.1} parent=1 // pred_fallthru
      _
    // Predicated region
    $region10: #{tpu_custom_call.1} parent=1 // pred_check
      _
    $region11: #{tpu_custom_call.1} parent=1 // pred_check_branch
      %38 = sbr.rel (0) target = $region13
    $region12: #{tpu_custom_call.1} parent=1 // pred_region
      %40 = vsyncadd [#allocation6], 0
      %s42 = sshll.u32 %s2, 4
      %s43 = int_to_ptr.hbm [resolvable:$true] %s42
      %s44 = sshll.u32 [#allocation7], 4
      %s45 = int_to_ptr.vmem [resolvable:$true] %s44
      %47 = dma.hbm_to_vmem [thread:$0]  %s43, 256, %s45, [#allocation6]
    $region13: #{tpu_custom_call.1} parent=1 // pred_fallthru
      _
    // Predicated region
    $region14: #{tpu_custom_call.1} parent=1 // pred_check
      _
    $region15: #{tpu_custom_call.1} parent=1 // pred_check_branch
      %49 = sbr.rel (0) target = $region17
    $region16: #{tpu_custom_call.1} parent=1 // pred_region
      %51 = dma.done [#allocation3], 256
    $region17: #{tpu_custom_call.1} parent=1 // pred_fallthru
      _
    // Predicated region
    $region18: #{tpu_custom_call.1} parent=1 // pred_check
      _
    $region19: #{tpu_custom_call.1} parent=1 // pred_check_branch
      %53 = sbr.rel (0) target = $region21
    $region20: #{tpu_custom_call.1} parent=1 // pred_region
      %55 = dma.done [#allocation6], 8192
    $region21: #{tpu_custom_call.1} parent=1 // pred_fallthru
      _
    // Predicated region
    $region22: #{tpu_custom_call.1} parent=1 // pred_check
      _
    $region23: #{tpu_custom_call.1} parent=1 // pred_check_branch
      %57 = sbr.rel (0) target = $region25
    $region24: #{tpu_custom_call.1} parent=1 // pred_region
      %59 = dma.done [#allocation6], 256
    $region25: #{tpu_custom_call.1} parent=1 // pred_fallthru
      _
    %v61 = vld [vmem:[#allocation2] sm:$0xf]
    %v62 = vld [vmem:[#allocation2 + $0x4] sm:$0xf]
    %v63 = vld [vmem:[#allocation2 + $0x8] sm:$0xf]
    %v64 = vld [vmem:[#allocation2 + $0xc] sm:$0xf]
    %v65 = vld [vmem:[#allocation5] sm:$0xff]
    %v66 = vld [vmem:[#allocation5 + $0x8] sm:$0xff]
    %v67 = vld [vmem:[#allocation5 + $0x10] sm:$0xff]
    %v68 = vld [vmem:[#allocation5 + $0x18] sm:$0xff]
    %v69 = vld [vmem:[#allocation7] ss:$8 sm:$0x3]
    %v71 = vperm.slane %v69, 0
    %v72 = vperm.slane %v69, 1
    %v79 = vunpack.c.l.b16 %v61
    %v80 = vunpack.c.l.b16 %v62
    %v81 = vunpack.c.l.b16 %v63
    %v82 = vunpack.c.l.b16 %v64
    %v83 = vpack.c.b16 %v80, %v79
    %v84 = vpack.c.b16 %v82, %v81
    %v89 = vunpack.c.l.b16 %v65
    %v90 = vunpack.c.h.b16 %v65
    %v91 = vunpack.c.l.b16 %v66
    %v92 = vunpack.c.h.b16 %v66
    %v93 = vunpack.c.l.b16 %v67
    %v94 = vunpack.c.h.b16 %v67
    %v95 = vunpack.c.l.b16 %v68
    %v96 = vunpack.c.h.b16 %v68
    %v97 = vpack.c.b16 %v91, %v89
    %v98 = vpack.c.b16 %v92, %v90
    %v99 = vpack.c.b16 %v95, %v93
    %v100 = vpack.c.b16 %v96, %v94
    %vm105 = vcmask 261120
    %v107 = vsel %vm105, %v83, 0
    %v110 = vsel %vm105, %v84, 0
    %112 = vmatpush.bf16.msra.mxu0 0
    %113 = vmatpush.bf16.msra.mxu0 0
    %114 = vmatpush.bf16.msra.mxu0 0
    %115 = vmatpush.bf16.msra.mxu0 0
    %116 = vmatpush.bf16.msra.mxu0 0
    %117 = vmatpush.bf16.msra.mxu0 0
    %118 = vmatpush.bf16.msra.mxu0 %v99
    %119 = vmatpush.bf16.msra.mxu0 %v97
    %120 = vmatmul.bf16.gmra.mxu0 %v107
    %v121 = vpop.f32.mrf.mxu0
    %v122 = vadd.f32 %v71, %v121
    %v123 = vpop.f32.mrf.mxu0
    %v124 = vadd.f32 %v71, %v123
    %125 = vmatmul.bf16.gmra.mxu0 %v110
    %v126 = vpop.f32.mrf.mxu0
    %v127 = vadd.f32 %v71, %v126
    %v128 = vpop.f32.mrf.mxu0
    %v129 = vadd.f32 %v71, %v128
    %130 = vdwg.mxu0
    %131 = vmatpush.bf16.msra.mxu0 0
    %132 = vmatpush.bf16.msra.mxu0 0
    %133 = vmatpush.bf16.msra.mxu0 0
    %134 = vmatpush.bf16.msra.mxu0 0
    %135 = vmatpush.bf16.msra.mxu0 0
    %136 = vmatpush.bf16.msra.mxu0 0
    %137 = vmatpush.bf16.msra.mxu0 %v100
    %138 = vmatpush.bf16.msra.mxu0 %v98
    %139 = vmatmul.bf16.gmra.mxu0 %v107
    %v140 = vpop.f32.mrf.mxu0
    %v141 = vadd.f32 %v72, %v140
    %v142 = vpop.f32.mrf.mxu0
    %v143 = vadd.f32 %v72, %v142
    %144 = vmatmul.bf16.gmra.mxu0 %v110
    %v145 = vpop.f32.mrf.mxu0
    %v146 = vadd.f32 %v72, %v145
    %v147 = vpop.f32.mrf.mxu0
    %v148 = vadd.f32 %v72, %v147
    %149 = vdwg.mxu0
    %v150 = vmax.f32 %v122, 0.0
    %v151 = vmax.f32 %v141, 0.0
    %v152 = vmax.f32 %v124, 0.0
    %v153 = vmax.f32 %v143, 0.0
    %v154 = vmax.f32 %v127, 0.0
    %v155 = vmax.f32 %v146, 0.0
    %v156 = vmax.f32 %v129, 0.0
    %v157 = vmax.f32 %v148, 0.0
    %v158 = vpack.c.bf16 %v152, %v150
    %v159 = vpack.c.bf16 %v153, %v151
    %v160 = vpack.c.bf16 %v156, %v154
    %v161 = vpack.c.bf16 %v157, %v155
    %v162 = vld [vmem:[#allocation5 + $0x20] sm:$0xf]
    %v163 = vld [vmem:[#allocation5 + $0x28] sm:$0xf]
    %v164 = vld [vmem:[#allocation5 + $0x30] sm:$0xf]
    %v165 = vld [vmem:[#allocation5 + $0x38] sm:$0xf]
    %v166 = vld [vmem:[#allocation5 + $0x40] sm:$0xf]
    %v167 = vld [vmem:[#allocation5 + $0x48] sm:$0xf]
    %v168 = vld [vmem:[#allocation5 + $0x50] sm:$0xf]
    %v169 = vld [vmem:[#allocation5 + $0x58] sm:$0xf]
    %v170 = vld [vmem:[#allocation5 + $0x60] sm:$0xf]
    %v171 = vld [vmem:[#allocation5 + $0x68] sm:$0xf]
    %v172 = vld [vmem:[#allocation5 + $0x70] sm:$0xf]
    %v173 = vld [vmem:[#allocation5 + $0x78] sm:$0xf]
    %v174 = vld [vmem:[#allocation5 + $0x80] sm:$0xf]
    %v175 = vld [vmem:[#allocation5 + $0x88] sm:$0xf]
    %v176 = vld [vmem:[#allocation5 + $0x90] sm:$0xf]
    %v177 = vld [vmem:[#allocation5 + $0x98] sm:$0xf]
    %v178 = vld [vmem:[#allocation5 + $0xa0] sm:$0xf]
    %v179 = vld [vmem:[#allocation5 + $0xa8] sm:$0xf]
    %v180 = vld [vmem:[#allocation5 + $0xb0] sm:$0xf]
    %v181 = vld [vmem:[#allocation5 + $0xb8] sm:$0xf]
    %v182 = vld [vmem:[#allocation5 + $0xc0] sm:$0xf]
    %v183 = vld [vmem:[#allocation5 + $0xc8] sm:$0xf]
    %v184 = vld [vmem:[#allocation5 + $0xd0] sm:$0xf]
    %v185 = vld [vmem:[#allocation5 + $0xd8] sm:$0xf]
    %v186 = vld [vmem:[#allocation5 + $0xe0] sm:$0xf]
    %v187 = vld [vmem:[#allocation5 + $0xe8] sm:$0xf]
    %v188 = vld [vmem:[#allocation5 + $0xf0] sm:$0xf]
    %v189 = vld [vmem:[#allocation5 + $0xf8] sm:$0xf]
    %v190 = vld [vmem:[#allocation5 + $0x100] sm:$0xf]
    %v191 = vld [vmem:[#allocation5 + $0x108] sm:$0xf]
    %v192 = vld [vmem:[#allocation5 + $0x110] sm:$0xf]
    %v193 = vld [vmem:[#allocation5 + $0x118] sm:$0xf]
    %v194 = vld [vmem:[#allocation7 + $0x1] ss:$0 sm:$0xff]
    %v227 = vunpack.c.l.b16 %v162
    %v228 = vunpack.c.l.b16 %v163
    %v229 = vunpack.c.l.b16 %v164
    %v230 = vunpack.c.l.b16 %v165
    %v231 = vunpack.c.l.b16 %v166
    %v232 = vunpack.c.l.b16 %v167
    %v233 = vunpack.c.l.b16 %v168
    %v234 = vunpack.c.l.b16 %v169
    %v235 = vunpack.c.l.b16 %v170
    %v236 = vunpack.c.l.b16 %v171
    %v237 = vunpack.c.l.b16 %v172
    %v238 = vunpack.c.l.b16 %v173
    %v239 = vunpack.c.l.b16 %v174
    %v240 = vunpack.c.l.b16 %v175
    %v241 = vunpack.c.l.b16 %v176
    %v242 = vunpack.c.l.b16 %v177
    %v243 = vunpack.c.l.b16 %v178
    %v244 = vunpack.c.l.b16 %v179
    %v245 = vunpack.c.l.b16 %v180
    %v246 = vunpack.c.l.b16 %v181
    %v247 = vunpack.c.l.b16 %v182
    %v248 = vunpack.c.l.b16 %v183
    %v249 = vunpack.c.l.b16 %v184
    %v250 = vunpack.c.l.b16 %v185
    %v251 = vunpack.c.l.b16 %v186
    %v252 = vunpack.c.l.b16 %v187
    %v253 = vunpack.c.l.b16 %v188
    %v254 = vunpack.c.l.b16 %v189
    %v255 = vunpack.c.l.b16 %v190
    %v256 = vunpack.c.l.b16 %v191
    %v257 = vunpack.c.l.b16 %v192
    %v258 = vunpack.c.l.b16 %v193
    %v259 = vpack.c.b16 %v228, %v227
    %v260 = vpack.c.b16 %v230, %v229
    %v261 = vpack.c.b16 %v232, %v231
    %v262 = vpack.c.b16 %v234, %v233
    %v263 = vpack.c.b16 %v236, %v235
    %v264 = vpack.c.b16 %v238, %v237
    %v265 = vpack.c.b16 %v240, %v239
    %v266 = vpack.c.b16 %v242, %v241
    %v267 = vpack.c.b16 %v244, %v243
    %v268 = vpack.c.b16 %v246, %v245
    %v269 = vpack.c.b16 %v248, %v247
    %v270 = vpack.c.b16 %v250, %v249
    %v271 = vpack.c.b16 %v252, %v251
    %v272 = vpack.c.b16 %v254, %v253
    %v273 = vpack.c.b16 %v256, %v255
    %v274 = vpack.c.b16 %v258, %v257
    %291 = vmatpush.bf16.msra.mxu0 %v266
    %292 = vmatpush.bf16.msra.mxu0 %v265
    %293 = vmatpush.bf16.msra.mxu0 %v264
    %294 = vmatpush.bf16.msra.mxu0 %v263
    %295 = vmatpush.bf16.msra.mxu0 %v262
    %296 = vmatpush.bf16.msra.mxu0 %v261
    %297 = vmatpush.bf16.msra.mxu0 %v260
    %298 = vmatpush.bf16.msra.mxu0 %v259
    %299 = vmatmul.bf16.gmra.mxu0 %v158
    %v300 = vpop.f32.mrf.mxu0
    %v301 = vadd.f32 %v194, %v300
    %v302 = vpop.f32.mrf.mxu0
    %v303 = vadd.f32 %v194, %v302
    %304 = vmatmul.bf16.gmra.mxu0 %v160
    %v305 = vpop.f32.mrf.mxu0
    %v306 = vadd.f32 %v194, %v305
    %v307 = vpop.f32.mrf.mxu0
    %v308 = vadd.f32 %v194, %v307
    %309 = vdwg.mxu0
    %310 = vmatpush.bf16.msra.mxu0 %v274
    %311 = vmatpush.bf16.msra.mxu0 %v273
    %312 = vmatpush.bf16.msra.mxu0 %v272
    %313 = vmatpush.bf16.msra.mxu0 %v271
    %314 = vmatpush.bf16.msra.mxu0 %v270
    %315 = vmatpush.bf16.msra.mxu0 %v269
    %316 = vmatpush.bf16.msra.mxu0 %v268
    %317 = vmatpush.bf16.msra.mxu0 %v267
    %318 = vmatmul.bf16.gmra.mxu0 %v159
    %v319 = vpop.f32.mrf.mxu0
    %v320 = vadd.f32 %v301, %v319
    %v321 = vpop.f32.mrf.mxu0
    %v322 = vadd.f32 %v303, %v321
    %323 = vmatmul.bf16.gmra.mxu0 %v161
    %v324 = vpop.f32.mrf.mxu0
    %v325 = vadd.f32 %v306, %v324
    %v326 = vpop.f32.mrf.mxu0
    %v327 = vadd.f32 %v308, %v326
    %328 = vdwg.mxu0
    %v329 = vmax.f32 %v320, 0.0
    %v330 = vmax.f32 %v322, 0.0
    %v331 = vmax.f32 %v325, 0.0
    %v332 = vmax.f32 %v327, 0.0
    %v333 = vpack.c.bf16 %v330, %v329
    %v334 = vpack.c.bf16 %v332, %v331
    %v335 = vld [vmem:[#allocation5 + $0x120] sm:$0xf]
    %v336 = vld [vmem:[#allocation5 + $0x128] sm:$0xf]
    %v337 = vld [vmem:[#allocation5 + $0x130] sm:$0xf]
    %v338 = vld [vmem:[#allocation5 + $0x138] sm:$0xf]
    %v339 = vld [vmem:[#allocation5 + $0x140] sm:$0xf]
    %v340 = vld [vmem:[#allocation5 + $0x148] sm:$0xf]
    %v341 = vld [vmem:[#allocation5 + $0x150] sm:$0xf]
    %v342 = vld [vmem:[#allocation5 + $0x158] sm:$0xf]
    %v343 = vld [vmem:[#allocation5 + $0x160] sm:$0xf]
    %v344 = vld [vmem:[#allocation5 + $0x168] sm:$0xf]
    %v345 = vld [vmem:[#allocation5 + $0x170] sm:$0xf]
    %v346 = vld [vmem:[#allocation5 + $0x178] sm:$0xf]
    %v347 = vld [vmem:[#allocation5 + $0x180] sm:$0xf]
    %v348 = vld [vmem:[#allocation5 + $0x188] sm:$0xf]
    %v349 = vld [vmem:[#allocation5 + $0x190] sm:$0xf]
    %v350 = vld [vmem:[#allocation5 + $0x198] sm:$0xf]
    %v351 = vld [vmem:[#allocation7 + $0x2] ss:$0 sm:$0xff]
    %v368 = vunpack.c.l.b16 %v335
    %v369 = vunpack.c.l.b16 %v336
    %v370 = vunpack.c.l.b16 %v337
    %v371 = vunpack.c.l.b16 %v338
    %v372 = vunpack.c.l.b16 %v339
    %v373 = vunpack.c.l.b16 %v340
    %v374 = vunpack.c.l.b16 %v341
    %v375 = vunpack.c.l.b16 %v342
    %v376 = vunpack.c.l.b16 %v343
    %v377 = vunpack.c.l.b16 %v344
    %v378 = vunpack.c.l.b16 %v345
    %v379 = vunpack.c.l.b16 %v346
    %v380 = vunpack.c.l.b16 %v347
    %v381 = vunpack.c.l.b16 %v348
    %v382 = vunpack.c.l.b16 %v349
    %v383 = vunpack.c.l.b16 %v350
    %v384 = vpack.c.b16 %v369, %v368
    %v385 = vpack.c.b16 %v371, %v370
    %v386 = vpack.c.b16 %v373, %v372
    %v387 = vpack.c.b16 %v375, %v374
    %v388 = vpack.c.b16 %v377, %v376
    %v389 = vpack.c.b16 %v379, %v378
    %v390 = vpack.c.b16 %v381, %v380
    %v391 = vpack.c.b16 %v383, %v382
    %400 = vmatpush.bf16.msra.mxu0 %v391
    %401 = vmatpush.bf16.msra.mxu0 %v390
    %402 = vmatpush.bf16.msra.mxu0 %v389
    %403 = vmatpush.bf16.msra.mxu0 %v388
    %404 = vmatpush.bf16.msra.mxu0 %v387
    %405 = vmatpush.bf16.msra.mxu0 %v386
    %406 = vmatpush.bf16.msra.mxu0 %v385
    %407 = vmatpush.bf16.msra.mxu0 %v384
    %408 = vmatmul.bf16.gmra.mxu0 %v333
    %v409 = vpop.f32.mrf.mxu0
    %v410 = vadd.f32 %v351, %v409
    %v411 = vpop.f32.mrf.mxu0
    %v412 = vadd.f32 %v351, %v411
    %413 = vmatmul.bf16.gmra.mxu0 %v334
    %v414 = vpop.f32.mrf.mxu0
    %v415 = vadd.f32 %v351, %v414
    %v416 = vpop.f32.mrf.mxu0
    %v417 = vadd.f32 %v351, %v416
    %418 = vdwg.mxu0
    %v419 = vmax.f32 %v410, 0.0
    %v420 = vmax.f32 %v412, 0.0
    %v421 = vmax.f32 %v415, 0.0
    %v422 = vmax.f32 %v417, 0.0
    %v423 = vpack.c.bf16 %v420, %v419
    %v424 = vpack.c.bf16 %v422, %v421
    %v425 = vld [vmem:[#allocation5 + $0x1a0] sm:$0xf]
    %v426 = vld [vmem:[#allocation5 + $0x1a8] sm:$0xf]
    %v427 = vld [vmem:[#allocation5 + $0x1b0] sm:$0xf]
    %v428 = vld [vmem:[#allocation5 + $0x1b8] sm:$0xf]
    %v429 = vld [vmem:[#allocation5 + $0x1c0] sm:$0xf]
    %v430 = vld [vmem:[#allocation5 + $0x1c8] sm:$0xf]
    %v431 = vld [vmem:[#allocation5 + $0x1d0] sm:$0xf]
    %v432 = vld [vmem:[#allocation5 + $0x1d8] sm:$0xf]
    %v433 = vld [vmem:[#allocation7 + $0x3] ss:$0 sm:$0xff]
    %v442 = vunpack.c.l.b16 %v425
    %v443 = vunpack.c.l.b16 %v426
    %v444 = vunpack.c.l.b16 %v427
    %v445 = vunpack.c.l.b16 %v428
    %v446 = vunpack.c.l.b16 %v429
    %v447 = vunpack.c.l.b16 %v430
    %v448 = vunpack.c.l.b16 %v431
    %v449 = vunpack.c.l.b16 %v432
    %v450 = vpack.c.b16 %v443, %v442
    %v451 = vpack.c.b16 %v445, %v444
    %v452 = vpack.c.b16 %v447, %v446
    %v453 = vpack.c.b16 %v449, %v448
    %vm458 = vcmask 523264
    %v460 = vsel %vm458, %v423, 0
    %v463 = vsel %vm458, %v424, 0
    %465 = vmatpush.bf16.msra.mxu0 0
    %466 = vmatpush.bf16.msra.mxu0 0
    %467 = vmatpush.bf16.msra.mxu0 0
    %468 = vmatpush.bf16.msra.mxu0 0
    %469 = vmatpush.bf16.msra.mxu0 %v453
    %470 = vmatpush.bf16.msra.mxu0 %v452
    %471 = vmatpush.bf16.msra.mxu0 %v451
    %472 = vmatpush.bf16.msra.mxu0 %v450
    %473 = vmatmul.bf16.gmra.mxu0 %v460
    %v474 = vpop.f32.mrf.mxu0
    %v475 = vadd.f32 %v433, %v474
    %v476 = vpop.f32.mrf.mxu0
    %v477 = vadd.f32 %v433, %v476
    %478 = vmatmul.bf16.gmra.mxu0 %v463
    %v479 = vpop.f32.mrf.mxu0
    %v480 = vadd.f32 %v433, %v479
    %v481 = vpop.f32.mrf.mxu0
    %v482 = vadd.f32 %v433, %v481
    %483 = vdwg.mxu0
    %v484 = vmax.f32 %v475, 0.0
    %v485 = vmax.f32 %v477, 0.0
    %v486 = vmax.f32 %v480, 0.0
    %v487 = vmax.f32 %v482, 0.0
    %v488 = vpack.c.bf16 %v485, %v484
    %v489 = vpack.c.bf16 %v487, %v486
    %v490 = vld [vmem:[#allocation5 + $0x1e0] sm:$0xf]
    %v491 = vld [vmem:[#allocation5 + $0x1e8] sm:$0xf]
    %v492 = vld [vmem:[#allocation5 + $0x1f0] sm:$0xf]
    %v493 = vld [vmem:[#allocation5 + $0x1f8] sm:$0xf]
    %v494 = vld [vmem:[#allocation7 + $0x4] ss:$0 sm:$0xff]
    %v499 = vunpack.c.l.b16 %v490
    %v500 = vunpack.c.l.b16 %v491
    %v501 = vunpack.c.l.b16 %v492
    %v502 = vunpack.c.l.b16 %v493
    %v503 = vpack.c.b16 %v500, %v499
    %v504 = vpack.c.b16 %v502, %v501
    %v508 = vsel %vm105, %v488, 0
    %v511 = vsel %vm105, %v489, 0
    %513 = vmatpush.bf16.msra.mxu0 0
    %514 = vmatpush.bf16.msra.mxu0 0
    %515 = vmatpush.bf16.msra.mxu0 0
    %516 = vmatpush.bf16.msra.mxu0 0
    %517 = vmatpush.bf16.msra.mxu0 0
    %518 = vmatpush.bf16.msra.mxu0 0
    %519 = vmatpush.bf16.msra.mxu0 %v504
    %520 = vmatpush.bf16.msra.mxu0 %v503
    %521 = vmatmul.bf16.gmra.mxu0 %v508
    %v522 = vpop.f32.mrf.mxu0
    %v523 = vadd.f32 %v494, %v522
    %v524 = vpop.f32.mrf.mxu0
    %v525 = vadd.f32 %v494, %v524
    %526 = vmatmul.bf16.gmra.mxu0 %v511
    %v527 = vpop.f32.mrf.mxu0
    %v528 = vadd.f32 %v494, %v527
    %v529 = vpop.f32.mrf.mxu0
    %v530 = vadd.f32 %v494, %v529
    %531 = vdwg.mxu0
    %v532 = vtanh.pop %v523
    %v533 = vtanh.pop %v525
    %v534 = vtanh.pop %v528
    %v535 = vtanh.pop %v530
    %536 = vst [vmem:[#allocation8] sm:$0xff] %v532
    %537 = vst [vmem:[#allocation8 + $0x8] sm:$0xff] %v533
    %538 = vst [vmem:[#allocation8 + $0x10] sm:$0xff] %v534
    %539 = vst [vmem:[#allocation8 + $0x18] sm:$0xff] %v535
    // Predicated region
    $region26: #{tpu_custom_call.1} parent=1 // pred_check
      _
    $region27: #{tpu_custom_call.1} parent=1 // pred_check_branch
      %541 = sbr.rel (0) target = $region29
    $region28: #{tpu_custom_call.1} parent=1 // pred_region
      %543 = vsyncadd [#allocation4], 0
      %s544 = sshll.u32 [#allocation8], 4
      %s545 = int_to_ptr.vmem [resolvable:$true] %s544
      %s546 = sshll.u32 %s3, 4
      %s547 = int_to_ptr.hbm [resolvable:$true] %s546
      %552 = dma.vmem_to_hbm [thread:$0]  %s545, 512, %s547, [#allocation4], 128, 128, 8
    $region29: #{tpu_custom_call.1} parent=1 // pred_fallthru
      _
    // Predicated region
    $region30: #{tpu_custom_call.1} parent=1 // pred_check
      _
    $region31: #{tpu_custom_call.1} parent=1 // pred_check_branch
      %554 = sbr.rel (0) target = $region33
    $region32: #{tpu_custom_call.1} parent=1 // pred_region
      %556 = dma.done [#allocation4], 512
    $region33: #{tpu_custom_call.1} parent=1 // pred_fallthru
      _
    %557 = vsyncpa [#allocation3], 1
    %558 = vsyncpa [#allocation6], 1
    %559 = vsyncpa [#allocation4], 1

</llo_original>
